<compile_context>
chip_gen: v7x
topology: tpu7x:2x2x1
jax: 0.10.0
libtpu: 0.0.40
codegen_flags: <defaults>
</compile_context>

<pallas_src>
import functools

import jax
import jax.numpy as jnp
from jax.experimental import pallas as pl
from jax.experimental.pallas import tpu as pltpu

LN_EPS = 1e-5            # nn.LayerNorm default eps
INV_SQRT2 = 0.7071067811865476


def projection_head_kernel(x_ref, w1_ref, b1_ref, w2_ref, b2_ref,
                           gamma_ref, beta_ref, o_ref, *, approximate_gelu):
    # Cast x to the MXU dtype in VMEM (avoids a separate HBM cast pass).
    x = x_ref[...].astype(w1_ref.dtype)

    # projected = self.projection(x)   (MXU, f32 accumulation)
    projected = jnp.dot(x, w1_ref[...],
                        preferred_element_type=jnp.float32) + b1_ref[...]

    # x = self.gelu(projected)
    if approximate_gelu:
        # tanh-GELU -> transcendental lands on the EUP slot (cheap epilogue).
        g = jax.nn.gelu(projected, approximate=True)
    else:
        # exact erf-GELU: strict nn.GELU() parity (long VPU polynomial).
        g = 0.5 * projected * (1.0 + jax.lax.erf(projected * INV_SQRT2))

    # x = self.fc(x)
    h = jnp.dot(g.astype(w2_ref.dtype), w2_ref[...],
                preferred_element_type=jnp.float32) + b2_ref[...]

    # x = self.dropout(x)  -- inference mode: identity
    # TODO(synk): training-mode dropout (prng mask + 1/(1-p) scale) not implemented.

    # x = x + projected   (residual, taken from the f32 `projected`)
    h = h + projected

    # x = self.layer_norm(x)  -- normalize over last dim, all in f32
    mean = jnp.mean(h, axis=-1, keepdims=True)
    c = h - mean
    var = jnp.mean(c * c, axis=-1, keepdims=True)
    normed = c * jax.lax.rsqrt(var + LN_EPS)
    o_ref[...] = (normed * gamma_ref[...] + beta_ref[...]).astype(o_ref.dtype)


def _vmem_capacity_bytes():
    """Physical per-core VMEM (128 MiB v5e/v6e, 64 MiB v7x); safe fallback."""
    try:
        cap = getattr(pltpu.get_tpu_info(), "vmem_capacity_bytes", None)
        if cap:
            return int(cap)
    except Exception:
        pass
    return 64 * 1024 * 1024   # conservative (v7x per-core figure)


def _choose_tiling(B, E, P, x_bytes, mm_bytes, out_bytes, vmem_limit):
    """Return (batch_tile, num_grid_steps) under a per-generation VMEM budget."""
    # Weights / biases: single-buffered (pl.Buffered(1)), resident across grid.
    weight_bytes = (E * P + P * P) * mm_bytes + 4 * P * 4
    # Per batch-row VMEM footprint.
    per_row = (2 * E * x_bytes       # double-buffered x tile (original dtype)
               + E * mm_bytes        # in-kernel MXU-dtype copy of the x tile
               + 2 * P * out_bytes   # double-buffered output tile
               + 5 * P * 4           # f32 temps: projected/gelu/h/centered/normed
               + P * mm_bytes)       # MXU-dtype copy of the GELU output
    tile_budget = max(vmem_limit - weight_bytes - (4 << 20), per_row * 8)
    tb_max = min(tile_budget // per_row, 4096)
    tb_max = max(8, (tb_max // 8) * 8)

    n = -(-B // tb_max)              # minimal number of steps that fits
    if B >= 16:
        n = max(n, 2)                # >=2 balanced steps -> v7x megacore
        if n % 2:
            n += 1
    tb = -(-B // n)
    tb = max(8, ((tb + 7) // 8) * 8)  # sublane-aligned, minimal padding
    return int(tb), int(n)


def projection_head(x, w1, b1, w2, b2, gamma, beta, *,
                    matmul_dtype=jnp.bfloat16, approximate_gelu=True):
    """x: (B, E). Returns (B, P) in x.dtype.

    matmul_dtype=None + approximate_gelu=False is the strict PyTorch-parity
    path (f32 matmuls, exact erf GELU)."""
    B, E = x.shape
    P = w1.shape[1]
    out_dtype = x.dtype

    mm_dtype = (jnp.dtype(matmul_dtype) if matmul_dtype is not None
                else jnp.dtype(w1.dtype))
    # Weights are cast once here (tiny vs. x); x is cast inside the kernel so
    # there is no extra HBM read/write pass over the activations.
    w1_mm = w1.astype(mm_dtype)
    w2_mm = w2.astype(mm_dtype)

    x_bytes = jnp.dtype(x.dtype).itemsize
    out_bytes = jnp.dtype(out_dtype).itemsize
    mm_bytes = mm_dtype.itemsize

    vmem_limit = max(_vmem_capacity_bytes() - (16 << 20), 32 << 20)
    tb, n_steps = _choose_tiling(B, E, P, x_bytes, mm_bytes, out_bytes,
                                 vmem_limit)
    B_pad = tb * n_steps
    # LayerNorm is per-row, so padded rows never contaminate valid rows.
    x_in = jnp.pad(x, ((0, B_pad - B), (0, 0))) if B_pad != B else x

    kernel = functools.partial(projection_head_kernel,
                               approximate_gelu=approximate_gelu)

    flops = 2 * B_pad * P * (E + P)
    cost = pl.CostEstimate(
        flops=int(flops),
        transcendentals=int(B_pad * P) if approximate_gelu else 0,
        bytes_accessed=int(B_pad * E * x_bytes + B_pad * P * out_bytes
                           + (E * P + P * P) * mm_bytes + 4 * P * 4))

    args = (x_in, w1_mm,
            b1.reshape(1, P).astype(jnp.float32),
            w2_mm,
            b2.reshape(1, P).astype(jnp.float32),
            gamma.reshape(1, P).astype(jnp.float32),
            beta.reshape(1, P).astype(jnp.float32))

    # TODO(synk): for very large embedding dims (E >~ 4096) add a trailing
    # "arbitrary" K-reduction grid axis over E with an f32 (tb, P) accumulator
    # so the (E, P) weight does not monopolize v7x's 64 MiB VMEM.

    def _run(single_buffer_weights):
        res_kwargs = ({"pipeline_mode": pl.Buffered(1)}
                      if single_buffer_weights else {})
        x_spec = pl.BlockSpec((tb, E), lambda i: (i, 0))
        w1_spec = pl.BlockSpec((E, P), lambda i: (0, 0), **res_kwargs)
        w2_spec = pl.BlockSpec((P, P), lambda i: (0, 0), **res_kwargs)
        row_spec = pl.BlockSpec((1, P), lambda i: (0, 0), **res_kwargs)
        out_spec = pl.BlockSpec((tb, P), lambda i: (i, 0))
        return pl.pallas_call(
            kernel,
            out_shape=jax.ShapeDtypeStruct((B_pad, P), out_dtype),
            grid=(n_steps,),
            in_specs=[x_spec, w1_spec, row_spec, w2_spec, row_spec,
                      row_spec, row_spec],
            out_specs=out_spec,
            compiler_params=pltpu.CompilerParams(
                dimension_semantics=("parallel",),
                vmem_limit_bytes=int(vmem_limit)),
            cost_estimate=cost,
        )(*args)

    try:
        # Grid-invariant weights/biases single-buffered (constant index_map).
        out = _run(True)
    except Exception:
        # Fallback if this Pallas build rejects pipeline_mode on pallas_call.
        out = _run(False)

    return out[:B] if B_pad != B else out


def projection_head_ref(x, w1, b1, w2, b2, gamma, beta, *,
                        approximate_gelu=True):
    """Pure-JAX reference (f32), matching the PyTorch forward."""
    projected = x @ w1 + b1
    if approximate_gelu:
        g = jax.nn.gelu(projected, approximate=True)
    else:
        g = 0.5 * projected * (1.0 + jax.lax.erf(projected * INV_SQRT2))
    h = g @ w2 + b2
    h = h + projected
    mean = jnp.mean(h, axis=-1, keepdims=True)
    var = jnp.mean((h - mean) ** 2, axis=-1, keepdims=True)
    return (h - mean) * jax.lax.rsqrt(var + LN_EPS) * gamma + beta


def init_params(key, embedding_dim, projection_dim):
    """Deterministic init mimicking nn.Linear (uniform +-1/sqrt(fan_in))
    and nn.LayerNorm (weight=1, bias=0)."""
    k1, k2, k3, k4 = jax.random.split(key, 4)
    s1 = 1.0 / jnp.sqrt(embedding_dim)
    s2 = 1.0 / jnp.sqrt(projection_dim)
    w1 = jax.random.uniform(k1, (embedding_dim, projection_dim), jnp.float32, -s1, s1)
    b1 = jax.random.uniform(k2, (projection_dim,), jnp.float32, -s1, s1)
    w2 = jax.random.uniform(k3, (projection_dim, projection_dim), jnp.float32, -s2, s2)
    b2 = jax.random.uniform(k4, (projection_dim,), jnp.float32, -s2, s2)
    gamma = jnp.ones((projection_dim,), jnp.float32)
    beta = jnp.zeros((projection_dim,), jnp.float32)
    return w1, b1, w2, b2, gamma, beta


if __name__ == "__main__":
    batch = 8
    embedding_dim = 32
    projection_dim = 128

    key = jax.random.PRNGKey(0)
    kx, kp = jax.random.split(key)
    x = jax.random.normal(kx, (batch, embedding_dim), jnp.float32)
    w1, b1, w2, b2, gamma, beta = init_params(kp, embedding_dim, projection_dim)

    # Default fast path: bf16 MXU operands (f32 accumulation), tanh-GELU.
    out = projection_head(x, w1, b1, w2, b2, gamma, beta)
    jax.block_until_ready(out)
    assert out.shape == (batch, projection_dim)
    assert bool(jnp.all(jnp.isfinite(out)))
    ref_fast = projection_head_ref(x, w1, b1, w2, b2, gamma, beta,
                                   approximate_gelu=True)
    assert float(jnp.max(jnp.abs(out - ref_fast))) < 5e-2

    # Strict-parity path: f32 matmuls + exact erf GELU (matches nn.GELU()).
    out_exact = projection_head(x, w1, b1, w2, b2, gamma, beta,
                                matmul_dtype=None, approximate_gelu=False)
    jax.block_until_ready(out_exact)
    ref_exact = projection_head_ref(x, w1, b1, w2, b2, gamma, beta,
                                    approximate_gelu=False)
    assert float(jnp.max(jnp.abs(out_exact - ref_exact))) < 5e-3

    print("KERNEL_OK")
</pallas_src>

<mosaic_0001>
module attributes {stable_mosaic.version = 11 : i64} {
  func.func @projection_head_kernel(%arg0: i32, %arg1: memref<8x32xf32, #tpu.memory_space<vmem>>, %arg2: memref<32x128xbf16, #tpu.memory_space<vmem>>, %arg3: memref<1x128xf32, #tpu.memory_space<vmem>>, %arg4: memref<128x128xbf16, #tpu.memory_space<vmem>>, %arg5: memref<1x128xf32, #tpu.memory_space<vmem>>, %arg6: memref<1x128xf32, #tpu.memory_space<vmem>>, %arg7: memref<1x128xf32, #tpu.memory_space<vmem>>, %arg8: memref<8x128xf32, #tpu.memory_space<vmem>>) attributes {dimension_semantics = [#tpu.dimension_semantics<parallel>], iteration_bounds = array<i64: 1>, scalar_prefetch = 0 : i64, scratch_operands = 0 : i64, tpu.core_type = #tpu.core_type<tc>, window_params = [{transform_indices = @transform_0, window_bounds = array<i64: 8, 32>}, {pipeline_mode = #tpu.pipeline_mode<synchronous>, transform_indices = @transform_1, window_bounds = array<i64: 32, 128>}, {pipeline_mode = #tpu.pipeline_mode<synchronous>, transform_indices = @transform_2, window_bounds = array<i64: 1, 128>}, {pipeline_mode = #tpu.pipeline_mode<synchronous>, transform_indices = @transform_3, window_bounds = array<i64: 128, 128>}, {pipeline_mode = #tpu.pipeline_mode<synchronous>, transform_indices = @transform_4, window_bounds = array<i64: 1, 128>}, {pipeline_mode = #tpu.pipeline_mode<synchronous>, transform_indices = @transform_5, window_bounds = array<i64: 1, 128>}, {pipeline_mode = #tpu.pipeline_mode<synchronous>, transform_indices = @transform_6, window_bounds = array<i64: 1, 128>}, {transform_indices = @transform_7, window_bounds = array<i64: 8, 128>}]} {
    %c0 = arith.constant 0 : index
    %c0_0 = arith.constant 0 : index
    %0 = vector.load %arg1[%c0, %c0_0] : memref<8x32xf32, #tpu.memory_space<vmem>>, vector<8x32xf32>
    %1 = arith.truncf %0 : vector<8x32xf32> to vector<8x32xbf16>
    %c0_1 = arith.constant 0 : index
    %c0_2 = arith.constant 0 : index
    %2 = vector.load %arg2[%c0_1, %c0_2] : memref<32x128xbf16, #tpu.memory_space<vmem>>, vector<32x128xbf16>
    %cst = arith.constant dense<0.000000e+00> : vector<8x128xf32>
    %3 = tpu.matmul %1, %2, %cst {dimension_numbers = #tpu.dot_dimension_numbers<[1], [0], [0], [1], [0, 0, 1, 1], [], []>} : vector<8x32xbf16>, vector<32x128xbf16>, vector<8x128xf32> -> vector<8x128xf32>
    %c0_3 = arith.constant 0 : index
    %c0_4 = arith.constant 0 : index
    %4 = vector.load %arg3[%c0_3, %c0_4] : memref<1x128xf32, #tpu.memory_space<vmem>>, vector<1x128xf32>
    %5 = vector.broadcast %4 : vector<1x128xf32> to vector<8x128xf32>
    %6 = arith.addf %3, %5 : vector<8x128xf32>
    %7 = arith.mulf %6, %6 : vector<8x128xf32>
    %8 = arith.mulf %6, %7 : vector<8x128xf32>
    %cst_5 = arith.constant 4.471500e-02 : f32
    %9 = vector.broadcast %cst_5 : f32 to vector<8x128xf32>
    %10 = arith.mulf %9, %8 : vector<8x128xf32>
    %11 = arith.addf %6, %10 : vector<8x128xf32>
    %cst_6 = arith.constant 0.797884583 : f32
    %12 = vector.broadcast %cst_6 : f32 to vector<8x128xf32>
    %13 = arith.mulf %12, %11 : vector<8x128xf32>
    %14 = math.tanh %13 : vector<8x128xf32>
    %cst_7 = arith.constant 1.000000e+00 : f32
    %15 = vector.broadcast %cst_7 : f32 to vector<8x128xf32>
    %16 = arith.addf %15, %14 : vector<8x128xf32>
    %cst_8 = arith.constant 5.000000e-01 : f32
    %17 = vector.broadcast %cst_8 : f32 to vector<8x128xf32>
    %18 = arith.mulf %17, %16 : vector<8x128xf32>
    %19 = arith.mulf %6, %18 : vector<8x128xf32>
    %20 = arith.truncf %19 : vector<8x128xf32> to vector<8x128xbf16>
    %c0_9 = arith.constant 0 : index
    %c0_10 = arith.constant 0 : index
    %21 = vector.load %arg4[%c0_9, %c0_10] : memref<128x128xbf16, #tpu.memory_space<vmem>>, vector<128x128xbf16>
    %cst_11 = arith.constant dense<0.000000e+00> : vector<8x128xf32>
    %22 = tpu.matmul %20, %21, %cst_11 {dimension_numbers = #tpu.dot_dimension_numbers<[1], [0], [0], [1], [0, 0, 1, 1], [], []>} : vector<8x128xbf16>, vector<128x128xbf16>, vector<8x128xf32> -> vector<8x128xf32>
    %c0_12 = arith.constant 0 : index
    %c0_13 = arith.constant 0 : index
    %23 = vector.load %arg5[%c0_12, %c0_13] : memref<1x128xf32, #tpu.memory_space<vmem>>, vector<1x128xf32>
    %24 = vector.broadcast %23 : vector<1x128xf32> to vector<8x128xf32>
    %25 = arith.addf %22, %24 : vector<8x128xf32>
    %26 = arith.addf %25, %6 : vector<8x128xf32>
    %cst_14 = arith.constant dense<0.000000e+00> : vector<8xf32>
    %27 = vector.multi_reduction <add>, %26, %cst_14 [1] : vector<8x128xf32> to vector<8xf32>
    %28 = vector.shape_cast %27 : vector<8xf32> to vector<8x1xf32>
    %cst_15 = arith.constant 1.280000e+02 : f32
    %29 = vector.broadcast %cst_15 : f32 to vector<8x1xf32>
    %30 = arith.divf %28, %29 : vector<8x1xf32>
    %31 = vector.broadcast %30 : vector<8x1xf32> to vector<8x128xf32>
    %32 = arith.subf %26, %31 : vector<8x128xf32>
    %33 = arith.mulf %32, %32 : vector<8x128xf32>
    %cst_16 = arith.constant dense<0.000000e+00> : vector<8xf32>
    %34 = vector.multi_reduction <add>, %33, %cst_16 [1] : vector<8x128xf32> to vector<8xf32>
    %35 = vector.shape_cast %34 : vector<8xf32> to vector<8x1xf32>
    %cst_17 = arith.constant 1.280000e+02 : f32
    %36 = vector.broadcast %cst_17 : f32 to vector<8x1xf32>
    %37 = arith.divf %35, %36 : vector<8x1xf32>
    %cst_18 = arith.constant 9.99999974E-6 : f32
    %38 = vector.broadcast %cst_18 : f32 to vector<8x1xf32>
    %39 = arith.addf %37, %38 : vector<8x1xf32>
    %40 = math.rsqrt %39 : vector<8x1xf32>
    %41 = vector.broadcast %40 : vector<8x1xf32> to vector<8x128xf32>
    %42 = arith.mulf %32, %41 : vector<8x128xf32>
    %c0_19 = arith.constant 0 : index
    %c0_20 = arith.constant 0 : index
    %43 = vector.load %arg6[%c0_19, %c0_20] : memref<1x128xf32, #tpu.memory_space<vmem>>, vector<1x128xf32>
    %44 = vector.broadcast %43 : vector<1x128xf32> to vector<8x128xf32>
    %45 = arith.mulf %42, %44 : vector<8x128xf32>
    %c0_21 = arith.constant 0 : index
    %c0_22 = arith.constant 0 : index
    %46 = vector.load %arg7[%c0_21, %c0_22] : memref<1x128xf32, #tpu.memory_space<vmem>>, vector<1x128xf32>
    %47 = vector.broadcast %46 : vector<1x128xf32> to vector<8x128xf32>
    %48 = arith.addf %45, %47 : vector<8x128xf32>
    %c0_23 = arith.constant 0 : index
    %c0_24 = arith.constant 0 : index
    %49 = vector.load %arg8[%c0_23, %c0_24] : memref<8x128xf32, #tpu.memory_space<vmem>>, vector<8x128xf32>
    tpu.vector_store %arg8[%c0_23, %c0_24], %48 {strides = array<i32>} : memref<8x128xf32, #tpu.memory_space<vmem>>, vector<8x128xf32>,
    return
  }
  func.func @transform_0(%arg0: i32) -> (i32, i32) {
    %c0_i32 = arith.constant 0 : i32
    %c0_i32_0 = arith.constant 0 : i32
    return %arg0, %c0_i32 : i32, i32
  }
  func.func @transform_1(%arg0: i32) -> (i32, i32) {
    %c0_i32 = arith.constant 0 : i32
    %c0_i32_0 = arith.constant 0 : i32
    %c0_i32_1 = arith.constant 0 : i32
    return %c0_i32, %c0_i32_0 : i32, i32
  }
  func.func @transform_2(%arg0: i32) -> (i32, i32) {
    %c0_i32 = arith.constant 0 : i32
    %c0_i32_0 = arith.constant 0 : i32
    %c0_i32_1 = arith.constant 0 : i32
    return %c0_i32, %c0_i32_0 : i32, i32
  }
  func.func @transform_3(%arg0: i32) -> (i32, i32) {
    %c0_i32 = arith.constant 0 : i32
    %c0_i32_0 = arith.constant 0 : i32
    %c0_i32_1 = arith.constant 0 : i32
    return %c0_i32, %c0_i32_0 : i32, i32
  }
  func.func @transform_4(%arg0: i32) -> (i32, i32) {
    %c0_i32 = arith.constant 0 : i32
    %c0_i32_0 = arith.constant 0 : i32
    %c0_i32_1 = arith.constant 0 : i32
    return %c0_i32, %c0_i32_0 : i32, i32
  }
  func.func @transform_5(%arg0: i32) -> (i32, i32) {
    %c0_i32 = arith.constant 0 : i32
    %c0_i32_0 = arith.constant 0 : i32
    %c0_i32_1 = arith.constant 0 : i32
    return %c0_i32, %c0_i32_0 : i32, i32
  }
  func.func @transform_6(%arg0: i32) -> (i32, i32) {
    %c0_i32 = arith.constant 0 : i32
    %c0_i32_0 = arith.constant 0 : i32
    %c0_i32_1 = arith.constant 0 : i32
    return %c0_i32, %c0_i32_0 : i32, i32
  }
  func.func @transform_7(%arg0: i32) -> (i32, i32) {
    %c0_i32 = arith.constant 0 : i32
    %c0_i32_0 = arith.constant 0 : i32
    return %arg0, %c0_i32 : i32, i32
  }
}

module attributes {stable_mosaic.version = 11 : i64} {
  func.func @projection_head_kernel(%arg0: i32, %arg1: memref<8x32xf32, #tpu.memory_space<vmem>>, %arg2: memref<32x128xbf16, #tpu.memory_space<vmem>>, %arg3: memref<1x128xf32, #tpu.memory_space<vmem>>, %arg4: memref<128x128xbf16, #tpu.memory_space<vmem>>, %arg5: memref<1x128xf32, #tpu.memory_space<vmem>>, %arg6: memref<1x128xf32, #tpu.memory_space<vmem>>, %arg7: memref<1x128xf32, #tpu.memory_space<vmem>>, %arg8: memref<8x128xf32, #tpu.memory_space<vmem>>) attributes {dimension_semantics = [#tpu.dimension_semantics<parallel>], iteration_bounds = array<i64: 1>, scalar_prefetch = 0 : i64, scratch_operands = 0 : i64, tpu.core_type = #tpu.core_type<tc>, window_params = [{transform_indices = @transform_0, window_bounds = array<i64: 8, 32>}, {pipeline_mode = #tpu.pipeline_mode<synchronous>, transform_indices = @transform_1, window_bounds = array<i64: 32, 128>}, {pipeline_mode = #tpu.pipeline_mode<synchronous>, transform_indices = @transform_2, window_bounds = array<i64: 1, 128>}, {pipeline_mode = #tpu.pipeline_mode<synchronous>, transform_indices = @transform_3, window_bounds = array<i64: 128, 128>}, {pipeline_mode = #tpu.pipeline_mode<synchronous>, transform_indices = @transform_4, window_bounds = array<i64: 1, 128>}, {pipeline_mode = #tpu.pipeline_mode<synchronous>, transform_indices = @transform_5, window_bounds = array<i64: 1, 128>}, {pipeline_mode = #tpu.pipeline_mode<synchronous>, transform_indices = @transform_6, window_bounds = array<i64: 1, 128>}, {transform_indices = @transform_7, window_bounds = array<i64: 8, 128>}]} {
    %c0 = arith.constant 0 : index
    %c0_0 = arith.constant 0 : index
    %0 = vector.load %arg1[%c0, %c0_0] : memref<8x32xf32, #tpu.memory_space<vmem>>, vector<8x32xf32>
    %1 = arith.truncf %0 : vector<8x32xf32> to vector<8x32xbf16>
    %c0_1 = arith.constant 0 : index
    %c0_2 = arith.constant 0 : index
    %2 = vector.load %arg2[%c0_1, %c0_2] : memref<32x128xbf16, #tpu.memory_space<vmem>>, vector<32x128xbf16>
    %cst = arith.constant dense<0.000000e+00> : vector<8x128xf32>
    %3 = tpu.matmul %1, %2, %cst {dimension_numbers = #tpu.dot_dimension_numbers<[1], [0], [0], [1], [0, 0, 1, 1], [], []>} : vector<8x32xbf16>, vector<32x128xbf16>, vector<8x128xf32> -> vector<8x128xf32>
    %c0_3 = arith.constant 0 : index
    %c0_4 = arith.constant 0 : index
    %4 = vector.load %arg3[%c0_3, %c0_4] : memref<1x128xf32, #tpu.memory_space<vmem>>, vector<1x128xf32>
    %5 = vector.broadcast %4 : vector<1x128xf32> to vector<8x128xf32>
    %6 = arith.addf %3, %5 : vector<8x128xf32>
    %7 = arith.mulf %6, %6 : vector<8x128xf32>
    %8 = arith.mulf %6, %7 : vector<8x128xf32>
    %cst_5 = arith.constant 4.471500e-02 : f32
    %9 = vector.broadcast %cst_5 : f32 to vector<8x128xf32>
    %10 = arith.mulf %9, %8 : vector<8x128xf32>
    %11 = arith.addf %6, %10 : vector<8x128xf32>
    %cst_6 = arith.constant 0.797884583 : f32
    %12 = vector.broadcast %cst_6 : f32 to vector<8x128xf32>
    %13 = arith.mulf %12, %11 : vector<8x128xf32>
    %14 = math.tanh %13 : vector<8x128xf32>
    %cst_7 = arith.constant 1.000000e+00 : f32
    %15 = vector.broadcast %cst_7 : f32 to vector<8x128xf32>
    %16 = arith.addf %15, %14 : vector<8x128xf32>
    %cst_8 = arith.constant 5.000000e-01 : f32
    %17 = vector.broadcast %cst_8 : f32 to vector<8x128xf32>
    %18 = arith.mulf %17, %16 : vector<8x128xf32>
    %19 = arith.mulf %6, %18 : vector<8x128xf32>
    %20 = arith.truncf %19 : vector<8x128xf32> to vector<8x128xbf16>
    %c0_9 = arith.constant 0 : index
    %c0_10 = arith.constant 0 : index
    %21 = vector.load %arg4[%c0_9, %c0_10] : memref<128x128xbf16, #tpu.memory_space<vmem>>, vector<128x128xbf16>
    %cst_11 = arith.constant dense<0.000000e+00> : vector<8x128xf32>
    %22 = tpu.matmul %20, %21, %cst_11 {dimension_numbers = #tpu.dot_dimension_numbers<[1], [0], [0], [1], [0, 0, 1, 1], [], []>} : vector<8x128xbf16>, vector<128x128xbf16>, vector<8x128xf32> -> vector<8x128xf32>
    %c0_12 = arith.constant 0 : index
    %c0_13 = arith.constant 0 : index
    %23 = vector.load %arg5[%c0_12, %c0_13] : memref<1x128xf32, #tpu.memory_space<vmem>>, vector<1x128xf32>
    %24 = vector.broadcast %23 : vector<1x128xf32> to vector<8x128xf32>
    %25 = arith.addf %22, %24 : vector<8x128xf32>
    %26 = arith.addf %25, %6 : vector<8x128xf32>
    %cst_14 = arith.constant dense<0.000000e+00> : vector<8xf32>
    %27 = vector.multi_reduction <add>, %26, %cst_14 [1] : vector<8x128xf32> to vector<8xf32>
    %28 = vector.shape_cast %27 : vector<8xf32> to vector<8x1xf32>
    %cst_15 = arith.constant 1.280000e+02 : f32
    %29 = vector.broadcast %cst_15 : f32 to vector<8x1xf32>
    %30 = arith.divf %28, %29 : vector<8x1xf32>
    %31 = vector.broadcast %30 : vector<8x1xf32> to vector<8x128xf32>
    %32 = arith.subf %26, %31 : vector<8x128xf32>
    %33 = arith.mulf %32, %32 : vector<8x128xf32>
    %cst_16 = arith.constant dense<0.000000e+00> : vector<8xf32>
    %34 = vector.multi_reduction <add>, %33, %cst_16 [1] : vector<8x128xf32> to vector<8xf32>
    %35 = vector.shape_cast %34 : vector<8xf32> to vector<8x1xf32>
    %cst_17 = arith.constant 1.280000e+02 : f32
    %36 = vector.broadcast %cst_17 : f32 to vector<8x1xf32>
    %37 = arith.divf %35, %36 : vector<8x1xf32>
    %cst_18 = arith.constant 9.99999974E-6 : f32
    %38 = vector.broadcast %cst_18 : f32 to vector<8x1xf32>
    %39 = arith.addf %37, %38 : vector<8x1xf32>
    %40 = math.rsqrt %39 : vector<8x1xf32>
    %41 = vector.broadcast %40 : vector<8x1xf32> to vector<8x128xf32>
    %42 = arith.mulf %32, %41 : vector<8x128xf32>
    %c0_19 = arith.constant 0 : index
    %c0_20 = arith.constant 0 : index
    %43 = vector.load %arg6[%c0_19, %c0_20] : memref<1x128xf32, #tpu.memory_space<vmem>>, vector<1x128xf32>
    %44 = vector.broadcast %43 : vector<1x128xf32> to vector<8x128xf32>
    %45 = arith.mulf %42, %44 : vector<8x128xf32>
    %c0_21 = arith.constant 0 : index
    %c0_22 = arith.constant 0 : index
    %46 = vector.load %arg7[%c0_21, %c0_22] : memref<1x128xf32, #tpu.memory_space<vmem>>, vector<1x128xf32>
    %47 = vector.broadcast %46 : vector<1x128xf32> to vector<8x128xf32>
    %48 = arith.addf %45, %47 : vector<8x128xf32>
    %c0_23 = arith.constant 0 : index
    %c0_24 = arith.constant 0 : index
    %49 = vector.load %arg8[%c0_23, %c0_24] : memref<8x128xf32, #tpu.memory_space<vmem>>, vector<8x128xf32>
    tpu.vector_store %arg8[%c0_23, %c0_24], %48 {strides = array<i32>} : memref<8x128xf32, #tpu.memory_space<vmem>>, vector<8x128xf32>,
    return
  }
  func.func @transform_0(%arg0: i32) -> (i32, i32) {
    %c0_i32 = arith.constant 0 : i32
    %c0_i32_0 = arith.constant 0 : i32
    return %arg0, %c0_i32 : i32, i32
  }
  func.func @transform_1(%arg0: i32) -> (i32, i32) {
    %c0_i32 = arith.constant 0 : i32
    %c0_i32_0 = arith.constant 0 : i32
    %c0_i32_1 = arith.constant 0 : i32
    return %c0_i32, %c0_i32_0 : i32, i32
  }
  func.func @transform_2(%arg0: i32) -> (i32, i32) {
    %c0_i32 = arith.constant 0 : i32
    %c0_i32_0 = arith.constant 0 : i32
    %c0_i32_1 = arith.constant 0 : i32
    return %c0_i32, %c0_i32_0 : i32, i32
  }
  func.func @transform_3(%arg0: i32) -> (i32, i32) {
    %c0_i32 = arith.constant 0 : i32
    %c0_i32_0 = arith.constant 0 : i32
    %c0_i32_1 = arith.constant 0 : i32
    return %c0_i32, %c0_i32_0 : i32, i32
  }
  func.func @transform_4(%arg0: i32) -> (i32, i32) {
    %c0_i32 = arith.constant 0 : i32
    %c0_i32_0 = arith.constant 0 : i32
    %c0_i32_1 = arith.constant 0 : i32
    return %c0_i32, %c0_i32_0 : i32, i32
  }
  func.func @transform_5(%arg0: i32) -> (i32, i32) {
    %c0_i32 = arith.constant 0 : i32
    %c0_i32_0 = arith.constant 0 : i32
    %c0_i32_1 = arith.constant 0 : i32
    return %c0_i32, %c0_i32_0 : i32, i32
  }
  func.func @transform_6(%arg0: i32) -> (i32, i32) {
    %c0_i32 = arith.constant 0 : i32
    %c0_i32_0 = arith.constant 0 : i32
    %c0_i32_1 = arith.constant 0 : i32
    return %c0_i32, %c0_i32_0 : i32, i32
  }
  func.func @transform_7(%arg0: i32) -> (i32, i32) {
    %c0_i32 = arith.constant 0 : i32
    %c0_i32_0 = arith.constant 0 : i32
    return %arg0, %c0_i32 : i32, i32
  }
}

</mosaic_0001>

<llo_original>
// kernel: tpu_custom_call.1
$region0: #{tpu_custom_call.1}
  #allocation0 [shape = 'u32[]', space=smem, size = 0x4, offset = 0x4, fixed_abs, tag = 'smem constant byte address 0x4 - core index']
  #allocation1 [shape = 'u32[144,128]{1,0:T(1,128)}', space=vmem, size = 0x12000, scoped, tag = 'internal scratch']
  %s0 = inlined_call_operand.hbm [shape: f32[8,32], index: 0, kind: input, shape index: {}]
  %s1 = inlined_call_operand.hbm [shape: bf16[32,128], index: 1, kind: input, shape index: {}]
  %s2 = inlined_call_operand.vmem [shape: f32[1,128], index: 2, kind: input, shape index: {}]
  %s3 = inlined_call_operand.hbm [shape: bf16[128,128], index: 3, kind: input, shape index: {}]
  %s4 = inlined_call_operand.vmem [shape: f32[1,128], index: 4, kind: input, shape index: {}]
  %s5 = inlined_call_operand.vmem [shape: f32[1,128], index: 5, kind: input, shape index: {}]
  %s6 = inlined_call_operand.vmem [shape: f32[1,128], index: 6, kind: input, shape index: {}]
  %s7 = inlined_call_operand.hbm [shape: f32[8,128], index: 7, kind: output, shape index: {}]
  %s8 = sld [smem:[#allocation0]]
  $region50: #{tpu_custom_call.1} parent=0
    _
  %s10 = ssub.s32 1, %s8
  %s11 = scalar_select 0, %s10, %s8
  $region1: #{tpu_custom_call.1} parent=0
    #allocation2 [shape = 'u8[4096]{0}', space=vmem, size = 0x1000, scoped, tag = 'input window, operand 0, single buffered']
    #allocation3 [shape = 's32[1]{0}', space=sflag, size = 0x4, scoped, tag = 'scoped memory for tpu_custom_call.1']
    #allocation4 [shape = 's32[1]{0}', space=sflag, size = 0x4, scoped, tag = 'scoped memory for tpu_custom_call.1']
    #allocation5 [shape = 'u8[8192]{0}', space=vmem, size = 0x2000, scoped, tag = 'input window, operand 1, single buffered']
    #allocation6 [shape = 's32[1]{0}', space=sflag, size = 0x4, scoped, tag = 'scoped memory for tpu_custom_call.1']
    #allocation7 [shape = 'u8[32768]{0}', space=vmem, size = 0x8000, scoped, tag = 'input window, operand 3, single buffered']
    #allocation8 [shape = 'u8[4096]{0}', space=vmem, size = 0x1000, scoped, tag = 'output window, operand 0, single buffered']
    %12 = vsyncpa [#allocation3], 0
    %13 = vsyncpa [#allocation6], 0
    %14 = vsyncpa [#allocation4], 0
    // Predicated region
    $region2: #{tpu_custom_call.1} parent=1 // pred_check
      _
    $region3: #{tpu_custom_call.1} parent=1 // pred_check_branch
      %16 = sbr.rel (0) target = $region5
    $region4: #{tpu_custom_call.1} parent=1 // pred_region
      %s18 = ssub.s32 128, 128
      %19 = vsyncadd [#allocation3], %s18
      %s21 = sshll.u32 [#allocation2], 4
      %s22 = int_to_ptr.vmem [resolvable:$true] %s21
      %24 = dma.hbm_to_vmem [thread:$0]  %s0, 128, %s22, [#allocation3]
    $region5: #{tpu_custom_call.1} parent=1 // pred_fallthru
      _
    // Predicated region
    $region6: #{tpu_custom_call.1} parent=1 // pred_check
      _
    $region7: #{tpu_custom_call.1} parent=1 // pred_check_branch
      %26 = sbr.rel (0) target = $region9
    $region8: #{tpu_custom_call.1} parent=1 // pred_region
      %s28 = ssub.s32 256, 256
      %29 = vsyncadd [#allocation6], %s28
      %s30 = sshll.u32 [#allocation5], 4
      %s31 = int_to_ptr.vmem [resolvable:$true] %s30
      %36 = dma.hbm_to_vmem [thread:$0]  %s1, 256, %s31, [#allocation6], 64, 64, 4
    $region9: #{tpu_custom_call.1} parent=1 // pred_fallthru
      _
    // Predicated region
    $region10: #{tpu_custom_call.1} parent=1 // pred_check
      _
    $region11: #{tpu_custom_call.1} parent=1 // pred_check_branch
      %38 = sbr.rel (0) target = $region13
    $region12: #{tpu_custom_call.1} parent=1 // pred_region
      _
    $region13: #{tpu_custom_call.1} parent=1 // pred_fallthru
      _
    // Predicated region
    $region14: #{tpu_custom_call.1} parent=1 // pred_check
      _
    $region15: #{tpu_custom_call.1} parent=1 // pred_check_branch
      %40 = sbr.rel (0) target = $region17
    $region16: #{tpu_custom_call.1} parent=1 // pred_region
      %s42 = ssub.s32 1024, 1024
      %43 = vsyncadd [#allocation6], %s42
      %s44 = sshll.u32 [#allocation7], 4
      %s45 = int_to_ptr.vmem [resolvable:$true] %s44
      %50 = dma.hbm_to_vmem [thread:$0]  %s3, 1024, %s45, [#allocation6], 64, 64, 4
    $region17: #{tpu_custom_call.1} parent=1 // pred_fallthru
      _
    // Predicated region
    $region18: #{tpu_custom_call.1} parent=1 // pred_check
      _
    $region19: #{tpu_custom_call.1} parent=1 // pred_check_branch
      %52 = sbr.rel (0) target = $region21
    $region20: #{tpu_custom_call.1} parent=1 // pred_region
      _
    $region21: #{tpu_custom_call.1} parent=1 // pred_fallthru
      _
    // Predicated region
    $region22: #{tpu_custom_call.1} parent=1 // pred_check
      _
    $region23: #{tpu_custom_call.1} parent=1 // pred_check_branch
      %54 = sbr.rel (0) target = $region25
    $region24: #{tpu_custom_call.1} parent=1 // pred_region
      _
    $region25: #{tpu_custom_call.1} parent=1 // pred_fallthru
      _
    // Predicated region
    $region26: #{tpu_custom_call.1} parent=1 // pred_check
      _
    $region27: #{tpu_custom_call.1} parent=1 // pred_check_branch
      %56 = sbr.rel (0) target = $region29
    $region28: #{tpu_custom_call.1} parent=1 // pred_region
      _
    $region29: #{tpu_custom_call.1} parent=1 // pred_fallthru
      _
    // Predicated region
    $region30: #{tpu_custom_call.1} parent=1 // pred_check
      _
    $region31: #{tpu_custom_call.1} parent=1 // pred_check_branch
      %58 = sbr.rel (0) target = $region33
    $region32: #{tpu_custom_call.1} parent=1 // pred_region
      %59 = dma.done [#allocation3], 128
    $region33: #{tpu_custom_call.1} parent=1 // pred_fallthru
      _
    // Predicated region
    $region34: #{tpu_custom_call.1} parent=1 // pred_check
      _
    $region35: #{tpu_custom_call.1} parent=1 // pred_check_branch
      %61 = sbr.rel (0) target = $region37
    $region36: #{tpu_custom_call.1} parent=1 // pred_region
      %62 = dma.done [#allocation6], 256
    $region37: #{tpu_custom_call.1} parent=1 // pred_fallthru
      _
    // Predicated region
    $region38: #{tpu_custom_call.1} parent=1 // pred_check
      _
    $region39: #{tpu_custom_call.1} parent=1 // pred_check_branch
      %64 = sbr.rel (0) target = $region41
    $region40: #{tpu_custom_call.1} parent=1 // pred_region
      %65 = dma.done [#allocation6], 1024
    $region41: #{tpu_custom_call.1} parent=1 // pred_fallthru
      _
    %v67 = vld [vmem:[#allocation2] sm:$0xff]
    %v68 = vpack.c.bf16 %v67, %v67
    %v69 = vld [vmem:[#allocation5] sm:$0xf]
    %v70 = vld [vmem:[#allocation5 + $0x4] sm:$0xf]
    %v71 = vld [vmem:[#allocation5 + $0x8] sm:$0xf]
    %v72 = vld [vmem:[#allocation5 + $0xc] sm:$0xf]
    %v73 = vld [vmem:[%s2] sm:$0x1]
    %v75 = vlaneseq
    %v76 = vshrl.u32 %v75, 7
    %v77 = vsub.s32 0, %v76
    %v78 = vrot.slane %v73, %v77
    %v84 = vunpack.c.l.b16 %v69
    %v85 = vunpack.c.l.b16 %v70
    %v86 = vunpack.c.l.b16 %v71
    %v87 = vunpack.c.l.b16 %v72
    %v88 = vpack.c.b16 %v85, %v84
    %v89 = vpack.c.b16 %v87, %v86
    %vm92 = vcmask 261120
    %v94 = vsel %vm92, %v68, 0
    %96 = vmatprep.subr.bf16.mxu0 0
    %97 = vmatpush1.bf16.msra.mxu0 %v88
    %98 = vmatprep.subr.bf16.mxu0 0
    %99 = vmatpush1.bf16.msra.mxu0 %v89
    %100 = vmatprep.subr.bf16.mxu0 0
    %101 = vmatpush1.bf16.msra.mxu0 0
    %102 = vmatprep.subr.bf16.mxu0 0
    %103 = vmatpush1.bf16.msra.mxu0 0
    %104 = vmatprep.subr.bf16.mxu0 0
    %105 = vmatpush1.bf16.msra.mxu0 0
    %106 = vmatprep.subr.bf16.mxu0 0
    %107 = vmatpush1.bf16.msra.mxu0 0
    %108 = vmatprep.subr.bf16.mxu0 0
    %109 = vmatpush1.bf16.msra.mxu0 0
    %110 = vmatprep.subr.bf16.mxu0 0
    %111 = vmatpush1.bf16.msra.mxu0 0
    %112 = vmatprep.subr.bf16.mxu0 0
    %113 = vmatpush1.bf16.msra.mxu0 0
    %114 = vmatprep.subr.bf16.mxu0 0
    %115 = vmatpush1.bf16.msra.mxu0 0
    %116 = vmatprep.subr.bf16.mxu0 0
    %117 = vmatpush1.bf16.msra.mxu0 0
    %118 = vmatprep.subr.bf16.mxu0 0
    %119 = vmatpush1.bf16.msra.mxu0 0
    %120 = vmatprep.subr.bf16.mxu0 0
    %121 = vmatpush1.bf16.msra.mxu0 0
    %122 = vmatprep.subr.bf16.mxu0 0
    %123 = vmatpush1.bf16.msra.mxu0 0
    %124 = vmatprep.subr.bf16.mxu0 0
    %125 = vmatpush1.bf16.msra.mxu0 0
    %126 = vmatprep.subr.bf16.mxu0 0
    %127 = vmatpush1.bf16.msra.mxu0 0
    %128 = vmatprep.mubr.bf16.mxu0 0
    %129 = vmatmul.mubr.bf16.gmra.mrb[0].mxu0 %v94
    %v130 = vpop.f32.mrb[0].mxu0
    %v131 = vadd.f32 %v78, %v130
    %v132 = vpop.f32.mrb[0].mxu0
    %v133 = vpop.f32.mrb[0].mxu0
    %v134 = vpop.f32.mrb[0].mxu0
    %135 = vdwg.mxu0
    %v136 = vmul.f32 %v131, %v131
    %v137 = vmul.f32 %v131, %v136
    %v138 = vmul.f32 %v137, 0.044715
    %v139 = vadd.f32 %v131, %v138
    %v140 = vmul.f32 %v139, 0.7978846
    %v141 = vtanh.pop %v140
    %v142 = vadd.f32 %v141, 1.0
    %v143 = vmul.f32 %v142, 0.5
    %v144 = vmul.f32 %v131, %v143
    %v145 = vpack.c.bf16 %v144, %v144
    %v146 = vld [vmem:[#allocation7] sm:$0xf]
    %v147 = vld [vmem:[#allocation7 + $0x4] sm:$0xf]
    %v148 = vld [vmem:[#allocation7 + $0x8] sm:$0xf]
    %v149 = vld [vmem:[#allocation7 + $0xc] sm:$0xf]
    %v150 = vld [vmem:[#allocation7 + $0x10] sm:$0xf]
    %v151 = vld [vmem:[#allocation7 + $0x14] sm:$0xf]
    %v152 = vld [vmem:[#allocation7 + $0x18] sm:$0xf]
    %v153 = vld [vmem:[#allocation7 + $0x1c] sm:$0xf]
    %v154 = vld [vmem:[#allocation7 + $0x20] sm:$0xf]
    %v155 = vld [vmem:[#allocation7 + $0x24] sm:$0xf]
    %v156 = vld [vmem:[#allocation7 + $0x28] sm:$0xf]
    %v157 = vld [vmem:[#allocation7 + $0x2c] sm:$0xf]
    %v158 = vld [vmem:[#allocation7 + $0x30] sm:$0xf]
    %v159 = vld [vmem:[#allocation7 + $0x34] sm:$0xf]
    %v160 = vld [vmem:[#allocation7 + $0x38] sm:$0xf]
    %v161 = vld [vmem:[#allocation7 + $0x3c] sm:$0xf]
    %v162 = vld [vmem:[%s4] sm:$0x1]
    %v164 = vlaneseq
    %v165 = vshrl.u32 %v164, 7
    %v166 = vsub.s32 0, %v165
    %v167 = vrot.slane %v162, %v166
    %v185 = vunpack.c.l.b16 %v146
    %v186 = vunpack.c.l.b16 %v147
    %v187 = vunpack.c.l.b16 %v148
    %v188 = vunpack.c.l.b16 %v149
    %v189 = vunpack.c.l.b16 %v150
    %v190 = vunpack.c.l.b16 %v151
    %v191 = vunpack.c.l.b16 %v152
    %v192 = vunpack.c.l.b16 %v153
    %v193 = vunpack.c.l.b16 %v154
    %v194 = vunpack.c.l.b16 %v155
    %v195 = vunpack.c.l.b16 %v156
    %v196 = vunpack.c.l.b16 %v157
    %v197 = vunpack.c.l.b16 %v158
    %v198 = vunpack.c.l.b16 %v159
    %v199 = vunpack.c.l.b16 %v160
    %v200 = vunpack.c.l.b16 %v161
    %v201 = vpack.c.b16 %v186, %v185
    %v202 = vpack.c.b16 %v188, %v187
    %v203 = vpack.c.b16 %v190, %v189
    %v204 = vpack.c.b16 %v192, %v191
    %v205 = vpack.c.b16 %v194, %v193
    %v206 = vpack.c.b16 %v196, %v195
    %v207 = vpack.c.b16 %v198, %v197
    %v208 = vpack.c.b16 %v200, %v199
    %217 = vmatprep.subr.bf16.mxu0 0
    %218 = vmatpush1.bf16.msra.mxu0 %v201
    %219 = vmatprep.subr.bf16.mxu0 0
    %220 = vmatpush1.bf16.msra.mxu0 %v202
    %221 = vmatprep.subr.bf16.mxu0 0
    %222 = vmatpush1.bf16.msra.mxu0 %v203
    %223 = vmatprep.subr.bf16.mxu0 0
    %224 = vmatpush1.bf16.msra.mxu0 %v204
    %225 = vmatprep.subr.bf16.mxu0 0
    %226 = vmatpush1.bf16.msra.mxu0 %v205
    %227 = vmatprep.subr.bf16.mxu0 0
    %228 = vmatpush1.bf16.msra.mxu0 %v206
    %229 = vmatprep.subr.bf16.mxu0 0
    %230 = vmatpush1.bf16.msra.mxu0 %v207
    %231 = vmatprep.subr.bf16.mxu0 0
    %232 = vmatpush1.bf16.msra.mxu0 %v208
    %233 = vmatprep.subr.bf16.mxu0 0
    %234 = vmatpush1.bf16.msra.mxu0 0
    %235 = vmatprep.subr.bf16.mxu0 0
    %236 = vmatpush1.bf16.msra.mxu0 0
    %237 = vmatprep.subr.bf16.mxu0 0
    %238 = vmatpush1.bf16.msra.mxu0 0
    %239 = vmatprep.subr.bf16.mxu0 0
    %240 = vmatpush1.bf16.msra.mxu0 0
    %241 = vmatprep.subr.bf16.mxu0 0
    %242 = vmatpush1.bf16.msra.mxu0 0
    %243 = vmatprep.subr.bf16.mxu0 0
    %244 = vmatpush1.bf16.msra.mxu0 0
    %245 = vmatprep.subr.bf16.mxu0 0
    %246 = vmatpush1.bf16.msra.mxu0 0
    %247 = vmatprep.subr.bf16.mxu0 0
    %248 = vmatpush1.bf16.msra.mxu0 0
    %249 = vmatprep.mubr.bf16.mxu0 0
    %250 = vmatmul.mubr.bf16.gmra.mrb[0].mxu0 %v145
    %v251 = vpop.f32.mrb[0].mxu0
    %v252 = vadd.f32 %v167, %v251
    %v253 = vpop.f32.mrb[0].mxu0
    %v254 = vpop.f32.mrb[0].mxu0
    %v255 = vpop.f32.mrb[0].mxu0
    %256 = vdwg.mxu0
    %v257 = vadd.f32 %v252, %v131
    %258 = vadd.xlane.f32.xlu0 %v257
    %v259 = vpop.xlane.xlu0 %258
    %v260 = vrcp.pop 128.0
    %v261 = vmul.f32 %v259, %v260
    %v262 = vsub.f32 %v257, %v261
    %v263 = vmul.f32 %v262, %v262
    %264 = vadd.xlane.f32.xlu0 %v263
    %v265 = vpop.xlane.xlu0 %264
    %v266 = vmul.f32 %v265, %v260
    %v267 = vadd.f32 %v266, 1e-05
    %v268 = vrsqrt.pop %v267
    %v269 = vmul.f32 %v262, %v268
    %v270 = vld [vmem:[%s5] sm:$0x1]
    %v272 = vlaneseq
    %v273 = vshrl.u32 %v272, 7
    %v274 = vsub.s32 0, %v273
    %v275 = vrot.slane %v270, %v274
    %v277 = vmul.f32 %v269, %v275
    %v278 = vld [vmem:[%s6] sm:$0x1]
    %v280 = vlaneseq
    %v281 = vshrl.u32 %v280, 7
    %v282 = vsub.s32 0, %v281
    %v283 = vrot.slane %v278, %v282
    %v285 = vadd.f32 %v277, %v283
    %286 = vst [vmem:[#allocation8] sm:$0xff] %v285
    // Predicated region
    $region42: #{tpu_custom_call.1} parent=1 // pred_check
      _
    $region43: #{tpu_custom_call.1} parent=1 // pred_check_branch
      %288 = sbr.rel (0) target = $region45
    $region44: #{tpu_custom_call.1} parent=1 // pred_region
      %s290 = ssub.s32 128, 128
      %291 = vsyncadd [#allocation4], %s290
      %s293 = sshll.u32 [#allocation8], 4
      %s294 = int_to_ptr.vmem [resolvable:$true] %s293
      %296 = dma.vmem_to_hbm [thread:$0]  %s294, 128, %s7, [#allocation4]
    $region45: #{tpu_custom_call.1} parent=1 // pred_fallthru
      _
    // Predicated region
    $region46: #{tpu_custom_call.1} parent=1 // pred_check
      _
    $region47: #{tpu_custom_call.1} parent=1 // pred_check_branch
      %298 = sbr.rel (0) target = $region49
    $region48: #{tpu_custom_call.1} parent=1 // pred_region
      %299 = dma.done [#allocation4], 128
    $region49: #{tpu_custom_call.1} parent=1 // pred_fallthru
      _
    %300 = vsyncpa [#allocation3], 1
    %301 = vsyncpa [#allocation6], 1
    %302 = vsyncpa [#allocation4], 1

// kernel: tpu_custom_call.1
$region0: #{tpu_custom_call.1}
  #allocation0 [shape = 'u32[]', space=smem, size = 0x4, offset = 0x4, fixed_abs, tag = 'smem constant byte address 0x4 - core index']
  #allocation1 [shape = 'u32[144,128]{1,0:T(1,128)}', space=vmem, size = 0x12000, scoped, tag = 'internal scratch']
  %s0 = inlined_call_operand.hbm [shape: f32[8,32], index: 0, kind: input, shape index: {}]
  %s1 = inlined_call_operand.hbm [shape: bf16[32,128], index: 1, kind: input, shape index: {}]
  %s2 = inlined_call_operand.vmem [shape: f32[1,128], index: 2, kind: input, shape index: {}]
  %s3 = inlined_call_operand.hbm [shape: bf16[128,128], index: 3, kind: input, shape index: {}]
  %s4 = inlined_call_operand.vmem [shape: f32[1,128], index: 4, kind: input, shape index: {}]
  %s5 = inlined_call_operand.vmem [shape: f32[1,128], index: 5, kind: input, shape index: {}]
  %s6 = inlined_call_operand.vmem [shape: f32[1,128], index: 6, kind: input, shape index: {}]
  %s7 = inlined_call_operand.hbm [shape: f32[8,128], index: 7, kind: output, shape index: {}]
  %s8 = sld [smem:[#allocation0]]
  $region50: #{tpu_custom_call.1} parent=0
    _
  %s10 = ssub.s32 1, %s8
  %s11 = scalar_select 0, %s10, %s8
  $region1: #{tpu_custom_call.1} parent=0
    #allocation2 [shape = 'u8[4096]{0}', space=vmem, size = 0x1000, scoped, tag = 'input window, operand 0, single buffered']
    #allocation3 [shape = 's32[1]{0}', space=sflag, size = 0x4, scoped, tag = 'scoped memory for tpu_custom_call.1']
    #allocation4 [shape = 's32[1]{0}', space=sflag, size = 0x4, scoped, tag = 'scoped memory for tpu_custom_call.1']
    #allocation5 [shape = 'u8[8192]{0}', space=vmem, size = 0x2000, scoped, tag = 'input window, operand 1, single buffered']
    #allocation6 [shape = 's32[1]{0}', space=sflag, size = 0x4, scoped, tag = 'scoped memory for tpu_custom_call.1']
    #allocation7 [shape = 'u8[32768]{0}', space=vmem, size = 0x8000, scoped, tag = 'input window, operand 3, single buffered']
    #allocation8 [shape = 'u8[4096]{0}', space=vmem, size = 0x1000, scoped, tag = 'output window, operand 0, single buffered']
    %12 = vsyncpa [#allocation3], 0
    %13 = vsyncpa [#allocation6], 0
    %14 = vsyncpa [#allocation4], 0
    // Predicated region
    $region2: #{tpu_custom_call.1} parent=1 // pred_check
      _
    $region3: #{tpu_custom_call.1} parent=1 // pred_check_branch
      %16 = sbr.rel (0) target = $region5
    $region4: #{tpu_custom_call.1} parent=1 // pred_region
      %s18 = ssub.s32 128, 128
      %19 = vsyncadd [#allocation3], %s18
      %s21 = sshll.u32 [#allocation2], 4
      %s22 = int_to_ptr.vmem [resolvable:$true] %s21
      %24 = dma.hbm_to_vmem [thread:$0]  %s0, 128, %s22, [#allocation3]
    $region5: #{tpu_custom_call.1} parent=1 // pred_fallthru
      _
    // Predicated region
    $region6: #{tpu_custom_call.1} parent=1 // pred_check
      _
    $region7: #{tpu_custom_call.1} parent=1 // pred_check_branch
      %26 = sbr.rel (0) target = $region9
    $region8: #{tpu_custom_call.1} parent=1 // pred_region
      %s28 = ssub.s32 256, 256
      %29 = vsyncadd [#allocation6], %s28
      %s30 = sshll.u32 [#allocation5], 4
      %s31 = int_to_ptr.vmem [resolvable:$true] %s30
      %36 = dma.hbm_to_vmem [thread:$0]  %s1, 256, %s31, [#allocation6], 64, 64, 4
    $region9: #{tpu_custom_call.1} parent=1 // pred_fallthru
      _
    // Predicated region
    $region10: #{tpu_custom_call.1} parent=1 // pred_check
      _
    $region11: #{tpu_custom_call.1} parent=1 // pred_check_branch
      %38 = sbr.rel (0) target = $region13
    $region12: #{tpu_custom_call.1} parent=1 // pred_region
      _
    $region13: #{tpu_custom_call.1} parent=1 // pred_fallthru
      _
    // Predicated region
    $region14: #{tpu_custom_call.1} parent=1 // pred_check
      _
    $region15: #{tpu_custom_call.1} parent=1 // pred_check_branch
      %40 = sbr.rel (0) target = $region17
    $region16: #{tpu_custom_call.1} parent=1 // pred_region
      %s42 = ssub.s32 1024, 1024
      %43 = vsyncadd [#allocation6], %s42
      %s44 = sshll.u32 [#allocation7], 4
      %s45 = int_to_ptr.vmem [resolvable:$true] %s44
      %50 = dma.hbm_to_vmem [thread:$0]  %s3, 1024, %s45, [#allocation6], 64, 64, 4
    $region17: #{tpu_custom_call.1} parent=1 // pred_fallthru
      _
    // Predicated region
    $region18: #{tpu_custom_call.1} parent=1 // pred_check
      _
    $region19: #{tpu_custom_call.1} parent=1 // pred_check_branch
      %52 = sbr.rel (0) target = $region21
    $region20: #{tpu_custom_call.1} parent=1 // pred_region
      _
    $region21: #{tpu_custom_call.1} parent=1 // pred_fallthru
      _
    // Predicated region
    $region22: #{tpu_custom_call.1} parent=1 // pred_check
      _
    $region23: #{tpu_custom_call.1} parent=1 // pred_check_branch
      %54 = sbr.rel (0) target = $region25
    $region24: #{tpu_custom_call.1} parent=1 // pred_region
      _
    $region25: #{tpu_custom_call.1} parent=1 // pred_fallthru
      _
    // Predicated region
    $region26: #{tpu_custom_call.1} parent=1 // pred_check
      _
    $region27: #{tpu_custom_call.1} parent=1 // pred_check_branch
      %56 = sbr.rel (0) target = $region29
    $region28: #{tpu_custom_call.1} parent=1 // pred_region
      _
    $region29: #{tpu_custom_call.1} parent=1 // pred_fallthru
      _
    // Predicated region
    $region30: #{tpu_custom_call.1} parent=1 // pred_check
      _
    $region31: #{tpu_custom_call.1} parent=1 // pred_check_branch
      %58 = sbr.rel (0) target = $region33
    $region32: #{tpu_custom_call.1} parent=1 // pred_region
      %59 = dma.done [#allocation3], 128
    $region33: #{tpu_custom_call.1} parent=1 // pred_fallthru
      _
    // Predicated region
    $region34: #{tpu_custom_call.1} parent=1 // pred_check
      _
    $region35: #{tpu_custom_call.1} parent=1 // pred_check_branch
      %61 = sbr.rel (0) target = $region37
    $region36: #{tpu_custom_call.1} parent=1 // pred_region
      %62 = dma.done [#allocation6], 256
    $region37: #{tpu_custom_call.1} parent=1 // pred_fallthru
      _
    // Predicated region
    $region38: #{tpu_custom_call.1} parent=1 // pred_check
      _
    $region39: #{tpu_custom_call.1} parent=1 // pred_check_branch
      %64 = sbr.rel (0) target = $region41
    $region40: #{tpu_custom_call.1} parent=1 // pred_region
      %65 = dma.done [#allocation6], 1024
    $region41: #{tpu_custom_call.1} parent=1 // pred_fallthru
      _
    %v67 = vld [vmem:[#allocation2] sm:$0xff]
    %v68 = vpack.c.bf16 %v67, %v67
    %v69 = vld [vmem:[#allocation5] sm:$0xf]
    %v70 = vld [vmem:[#allocation5 + $0x4] sm:$0xf]
    %v71 = vld [vmem:[#allocation5 + $0x8] sm:$0xf]
    %v72 = vld [vmem:[#allocation5 + $0xc] sm:$0xf]
    %v73 = vld [vmem:[%s2] sm:$0x1]
    %v75 = vlaneseq
    %v76 = vshrl.u32 %v75, 7
    %v77 = vsub.s32 0, %v76
    %v78 = vrot.slane %v73, %v77
    %v84 = vunpack.c.l.b16 %v69
    %v85 = vunpack.c.l.b16 %v70
    %v86 = vunpack.c.l.b16 %v71
    %v87 = vunpack.c.l.b16 %v72
    %v88 = vpack.c.b16 %v85, %v84
    %v89 = vpack.c.b16 %v87, %v86
    %vm92 = vcmask 261120
    %v94 = vsel %vm92, %v68, 0
    %96 = vmatprep.subr.bf16.mxu0 0
    %97 = vmatpush1.bf16.msra.mxu0 %v88
    %98 = vmatprep.subr.bf16.mxu0 0
    %99 = vmatpush1.bf16.msra.mxu0 %v89
    %100 = vmatprep.subr.bf16.mxu0 0
    %101 = vmatpush1.bf16.msra.mxu0 0
    %102 = vmatprep.subr.bf16.mxu0 0
    %103 = vmatpush1.bf16.msra.mxu0 0
    %104 = vmatprep.subr.bf16.mxu0 0
    %105 = vmatpush1.bf16.msra.mxu0 0
    %106 = vmatprep.subr.bf16.mxu0 0
    %107 = vmatpush1.bf16.msra.mxu0 0
    %108 = vmatprep.subr.bf16.mxu0 0
    %109 = vmatpush1.bf16.msra.mxu0 0
    %110 = vmatprep.subr.bf16.mxu0 0
    %111 = vmatpush1.bf16.msra.mxu0 0
    %112 = vmatprep.subr.bf16.mxu0 0
    %113 = vmatpush1.bf16.msra.mxu0 0
    %114 = vmatprep.subr.bf16.mxu0 0
    %115 = vmatpush1.bf16.msra.mxu0 0
    %116 = vmatprep.subr.bf16.mxu0 0
    %117 = vmatpush1.bf16.msra.mxu0 0
    %118 = vmatprep.subr.bf16.mxu0 0
    %119 = vmatpush1.bf16.msra.mxu0 0
    %120 = vmatprep.subr.bf16.mxu0 0
    %121 = vmatpush1.bf16.msra.mxu0 0
    %122 = vmatprep.subr.bf16.mxu0 0
    %123 = vmatpush1.bf16.msra.mxu0 0
    %124 = vmatprep.subr.bf16.mxu0 0
    %125 = vmatpush1.bf16.msra.mxu0 0
    %126 = vmatprep.subr.bf16.mxu0 0
    %127 = vmatpush1.bf16.msra.mxu0 0
    %128 = vmatprep.mubr.bf16.mxu0 0
    %129 = vmatmul.mubr.bf16.gmra.mrb[0].mxu0 %v94
    %v130 = vpop.f32.mrb[0].mxu0
    %v131 = vadd.f32 %v78, %v130
    %v132 = vpop.f32.mrb[0].mxu0
    %v133 = vpop.f32.mrb[0].mxu0
    %v134 = vpop.f32.mrb[0].mxu0
    %135 = vdwg.mxu0
    %v136 = vmul.f32 %v131, %v131
    %v137 = vmul.f32 %v131, %v136
    %v138 = vmul.f32 %v137, 0.044715
    %v139 = vadd.f32 %v131, %v138
    %v140 = vmul.f32 %v139, 0.7978846
    %v141 = vtanh.pop %v140
    %v142 = vadd.f32 %v141, 1.0
    %v143 = vmul.f32 %v142, 0.5
    %v144 = vmul.f32 %v131, %v143
    %v145 = vpack.c.bf16 %v144, %v144
    %v146 = vld [vmem:[#allocation7] sm:$0xf]
    %v147 = vld [vmem:[#allocation7 + $0x4] sm:$0xf]
    %v148 = vld [vmem:[#allocation7 + $0x8] sm:$0xf]
    %v149 = vld [vmem:[#allocation7 + $0xc] sm:$0xf]
    %v150 = vld [vmem:[#allocation7 + $0x10] sm:$0xf]
    %v151 = vld [vmem:[#allocation7 + $0x14] sm:$0xf]
    %v152 = vld [vmem:[#allocation7 + $0x18] sm:$0xf]
    %v153 = vld [vmem:[#allocation7 + $0x1c] sm:$0xf]
    %v154 = vld [vmem:[#allocation7 + $0x20] sm:$0xf]
    %v155 = vld [vmem:[#allocation7 + $0x24] sm:$0xf]
    %v156 = vld [vmem:[#allocation7 + $0x28] sm:$0xf]
    %v157 = vld [vmem:[#allocation7 + $0x2c] sm:$0xf]
    %v158 = vld [vmem:[#allocation7 + $0x30] sm:$0xf]
    %v159 = vld [vmem:[#allocation7 + $0x34] sm:$0xf]
    %v160 = vld [vmem:[#allocation7 + $0x38] sm:$0xf]
    %v161 = vld [vmem:[#allocation7 + $0x3c] sm:$0xf]
    %v162 = vld [vmem:[%s4] sm:$0x1]
    %v164 = vlaneseq
    %v165 = vshrl.u32 %v164, 7
    %v166 = vsub.s32 0, %v165
    %v167 = vrot.slane %v162, %v166
    %v185 = vunpack.c.l.b16 %v146
    %v186 = vunpack.c.l.b16 %v147
    %v187 = vunpack.c.l.b16 %v148
    %v188 = vunpack.c.l.b16 %v149
    %v189 = vunpack.c.l.b16 %v150
    %v190 = vunpack.c.l.b16 %v151
    %v191 = vunpack.c.l.b16 %v152
    %v192 = vunpack.c.l.b16 %v153
    %v193 = vunpack.c.l.b16 %v154
    %v194 = vunpack.c.l.b16 %v155
    %v195 = vunpack.c.l.b16 %v156
    %v196 = vunpack.c.l.b16 %v157
    %v197 = vunpack.c.l.b16 %v158
    %v198 = vunpack.c.l.b16 %v159
    %v199 = vunpack.c.l.b16 %v160
    %v200 = vunpack.c.l.b16 %v161
    %v201 = vpack.c.b16 %v186, %v185
    %v202 = vpack.c.b16 %v188, %v187
    %v203 = vpack.c.b16 %v190, %v189
    %v204 = vpack.c.b16 %v192, %v191
    %v205 = vpack.c.b16 %v194, %v193
    %v206 = vpack.c.b16 %v196, %v195
    %v207 = vpack.c.b16 %v198, %v197
    %v208 = vpack.c.b16 %v200, %v199
    %217 = vmatprep.subr.bf16.mxu0 0
    %218 = vmatpush1.bf16.msra.mxu0 %v201
    %219 = vmatprep.subr.bf16.mxu0 0
    %220 = vmatpush1.bf16.msra.mxu0 %v202
    %221 = vmatprep.subr.bf16.mxu0 0
    %222 = vmatpush1.bf16.msra.mxu0 %v203
    %223 = vmatprep.subr.bf16.mxu0 0
    %224 = vmatpush1.bf16.msra.mxu0 %v204
    %225 = vmatprep.subr.bf16.mxu0 0
    %226 = vmatpush1.bf16.msra.mxu0 %v205
    %227 = vmatprep.subr.bf16.mxu0 0
    %228 = vmatpush1.bf16.msra.mxu0 %v206
    %229 = vmatprep.subr.bf16.mxu0 0
    %230 = vmatpush1.bf16.msra.mxu0 %v207
    %231 = vmatprep.subr.bf16.mxu0 0
    %232 = vmatpush1.bf16.msra.mxu0 %v208
    %233 = vmatprep.subr.bf16.mxu0 0
    %234 = vmatpush1.bf16.msra.mxu0 0
    %235 = vmatprep.subr.bf16.mxu0 0
    %236 = vmatpush1.bf16.msra.mxu0 0
    %237 = vmatprep.subr.bf16.mxu0 0
    %238 = vmatpush1.bf16.msra.mxu0 0
    %239 = vmatprep.subr.bf16.mxu0 0
    %240 = vmatpush1.bf16.msra.mxu0 0
    %241 = vmatprep.subr.bf16.mxu0 0
    %242 = vmatpush1.bf16.msra.mxu0 0
    %243 = vmatprep.subr.bf16.mxu0 0
    %244 = vmatpush1.bf16.msra.mxu0 0
    %245 = vmatprep.subr.bf16.mxu0 0
    %246 = vmatpush1.bf16.msra.mxu0 0
    %247 = vmatprep.subr.bf16.mxu0 0
    %248 = vmatpush1.bf16.msra.mxu0 0
    %249 = vmatprep.mubr.bf16.mxu0 0
    %250 = vmatmul.mubr.bf16.gmra.mrb[0].mxu0 %v145
    %v251 = vpop.f32.mrb[0].mxu0
    %v252 = vadd.f32 %v167, %v251
    %v253 = vpop.f32.mrb[0].mxu0
    %v254 = vpop.f32.mrb[0].mxu0
    %v255 = vpop.f32.mrb[0].mxu0
    %256 = vdwg.mxu0
    %v257 = vadd.f32 %v252, %v131
    %258 = vadd.xlane.f32.xlu0 %v257
    %v259 = vpop.xlane.xlu0 %258
    %v260 = vrcp.pop 128.0
    %v261 = vmul.f32 %v259, %v260
    %v262 = vsub.f32 %v257, %v261
    %v263 = vmul.f32 %v262, %v262
    %264 = vadd.xlane.f32.xlu0 %v263
    %v265 = vpop.xlane.xlu0 %264
    %v266 = vmul.f32 %v265, %v260
    %v267 = vadd.f32 %v266, 1e-05
    %v268 = vrsqrt.pop %v267
    %v269 = vmul.f32 %v262, %v268
    %v270 = vld [vmem:[%s5] sm:$0x1]
    %v272 = vlaneseq
    %v273 = vshrl.u32 %v272, 7
    %v274 = vsub.s32 0, %v273
    %v275 = vrot.slane %v270, %v274
    %v277 = vmul.f32 %v269, %v275
    %v278 = vld [vmem:[%s6] sm:$0x1]
    %v280 = vlaneseq
    %v281 = vshrl.u32 %v280, 7
    %v282 = vsub.s32 0, %v281
    %v283 = vrot.slane %v278, %v282
    %v285 = vadd.f32 %v277, %v283
    %286 = vst [vmem:[#allocation8] sm:$0xff] %v285
    // Predicated region
    $region42: #{tpu_custom_call.1} parent=1 // pred_check
      _
    $region43: #{tpu_custom_call.1} parent=1 // pred_check_branch
      %288 = sbr.rel (0) target = $region45
    $region44: #{tpu_custom_call.1} parent=1 // pred_region
      %s290 = ssub.s32 128, 128
      %291 = vsyncadd [#allocation4], %s290
      %s293 = sshll.u32 [#allocation8], 4
      %s294 = int_to_ptr.vmem [resolvable:$true] %s293
      %296 = dma.vmem_to_hbm [thread:$0]  %s294, 128, %s7, [#allocation4]
    $region45: #{tpu_custom_call.1} parent=1 // pred_fallthru
      _
    // Predicated region
    $region46: #{tpu_custom_call.1} parent=1 // pred_check
      _
    $region47: #{tpu_custom_call.1} parent=1 // pred_check_branch
      %298 = sbr.rel (0) target = $region49
    $region48: #{tpu_custom_call.1} parent=1 // pred_region
      %299 = dma.done [#allocation4], 128
    $region49: #{tpu_custom_call.1} parent=1 // pred_fallthru
      _
    %300 = vsyncpa [#allocation3], 1
    %301 = vsyncpa [#allocation6], 1
    %302 = vsyncpa [#allocation4], 1

</llo_original>
